<compile_context>
chip_gen: v7x
topology: tpu7x:2x2x1
jax: 0.10.0
libtpu: 0.0.40
codegen_flags: <defaults>
</compile_context>

<pallas_src>
import math

import jax
import jax.numpy as jnp
from jax.experimental import pallas as pl
from jax.experimental.pallas import tpu as pltpu


# --------------------------------------------------------------------------
# Helpers
# --------------------------------------------------------------------------
def _default_block_bytes():
    """Generation-aware block-byte target (review item: v5e ~3 MiB, v6e/v7x ~6 MiB)."""
    try:
        kind = jax.devices()[0].device_kind.lower()
    except Exception:
        kind = ""
    if "v5 lite" in kind or "v5e" in kind or "v5litepod" in kind:
        return 3 * 1024 * 1024
    return 6 * 1024 * 1024


def _largest_divisor_tile(total, align, cap):
    """Largest d <= cap with d % align == 0 and total % d == 0 (None if none)."""
    best = None
    d = align
    limit = min(total, cap)
    while d <= limit:
        if total % d == 0:
            best = d
        d += align
    return best


def _pick_row_tile(m, num_vecs, sub_align, cap=256):
    """Row tile for the fused matmul: either a divisor of num_vecs (so every
    row block maps to a contiguous pos_emb slice) or a multiple of num_vecs."""
    if m <= cap:
        return m                                    # full extent -> always legal
    best = _largest_divisor_tile(num_vecs, sub_align, cap)
    if best is not None:
        return best                                 # tm | num_vecs, tm % sub == 0
    g = math.gcd(num_vecs, sub_align)
    tm = num_vecs * (sub_align // g)                # num_vecs | tm, tm % sub == 0
    while tm * 2 <= cap:
        tm *= 2
    return min(tm, m)


# --------------------------------------------------------------------------
# 1. Fused SoftSplit.embedding + AddPosEmb  (matmul + bias + pos epilogue)
# --------------------------------------------------------------------------
def _embed_pos_kernel(x_ref, w_ref, b_ref, pos_ref, o_ref, acc_ref):
    @pl.when(pl.program_id(2) == 0)
    def _():
        acc_ref[...] = jnp.zeros_like(acc_ref)

    acc_ref[...] += jnp.dot(x_ref[...], w_ref[...],
                            preferred_element_type=jnp.float32)

    @pl.when(pl.program_id(2) == pl.num_programs(2) - 1)
    def _():
        o_ref[...] = (acc_ref[...]
                      + b_ref[...].astype(jnp.float32)
                      + pos_ref[...].astype(jnp.float32)).astype(o_ref.dtype)


def soft_split_embed_add_pos(patches, weight, bias, pos_emb):
    """Fused SoftSplit.embedding + AddPosEmb.

    patches : (b, n, c_in) unfolded patch vectors, n = t * num_vecs
              (rows ordered (b, t, num_vecs) as in the PyTorch view)
    weight  : (c_in, hidden)     bias : (hidden,)     pos_emb : (num_vecs, hidden)
    returns : (b, n, hidden) = patches @ weight + bias + pos_emb (per group)
    """
    b, n, c_in = patches.shape
    num_vecs, hidden = pos_emb.shape
    assert n % num_vecs == 0, "sequence length must be a multiple of num_vecs"
    assert weight.shape == (c_in, hidden)
    assert bias.shape == (hidden,)

    m = b * n
    x2 = patches.reshape(m, c_in)
    w2 = weight.astype(patches.dtype)
    bias2 = bias.reshape(1, hidden).astype(patches.dtype)
    pos2 = pos_emb.astype(patches.dtype)

    itemsize = jnp.dtype(patches.dtype).itemsize
    sub_align = max(8, 32 // itemsize)

    tm = _pick_row_tile(m, num_vecs, sub_align)
    tn = _largest_divisor_tile(hidden, 128, 512) or hidden
    tk = _largest_divisor_tile(c_in, 128, 1024) or c_in

    if num_vecs % tm == 0:
        # Row block i needs pos rows [i*tm % num_vecs : + tm]; expressed purely
        # through the index_map (no in-kernel slicing).
        pos_in = pos2
        n_pos_blocks = num_vecs // tm
        pos_idx = lambda i, j, k: (i % n_pos_blocks, j)
    else:
        # tm is a multiple of num_vecs: pre-tile pos to tm rows (tiny) so the
        # epilogue is a plain full-block add.
        assert tm % num_vecs == 0
        pos_in = jnp.tile(pos2, (tm // num_vecs, 1))
        pos_idx = lambda i, j, k: (0, j)

    grid = (pl.cdiv(m, tm), hidden // tn, c_in // tk)

    out2 = pl.pallas_call(
        _embed_pos_kernel,
        out_shape=jax.ShapeDtypeStruct((m, hidden), patches.dtype),
        grid_spec=pltpu.PrefetchScalarGridSpec(
            num_scalar_prefetch=0,
            grid=grid,
            in_specs=[
                pl.BlockSpec((tm, tk), lambda i, j, k: (i, k)),
                pl.BlockSpec((tk, tn), lambda i, j, k: (k, j)),
                pl.BlockSpec((1, tn), lambda i, j, k: (0, j)),
                pl.BlockSpec((tm, tn), pos_idx),
            ],
            out_specs=pl.BlockSpec((tm, tn), lambda i, j, k: (i, j)),
            scratch_shapes=[pltpu.VMEM((tm, tn), jnp.float32)],
        ),
        compiler_params=pltpu.CompilerParams(
            dimension_semantics=("parallel", "parallel", "arbitrary")),
    )(x2, w2, bias2, pos_in)

    return out2.reshape(b, n, hidden)


# --------------------------------------------------------------------------
# 2. Standalone AddPosEmb fallback (pure mem-bound broadcast add)
# --------------------------------------------------------------------------
def _add_pos_emb_kernel(x_ref, pos_ref, o_ref):
    # x_ref: (row_tile, lane_tile) slab of flattened groups
    # pos_ref: (1, lane_tile) chunk of the flattened positional embedding
    o_ref[...] = x_ref[...] + pos_ref[...]


def _choose_tiles(rows, lanes, itemsize, target_block_bytes):
    lane_align = 128
    sub_align = max(8, 32 // itemsize)
    max_lane_elems = max(
        lane_align,
        (target_block_bytes // (sub_align * itemsize)) // lane_align * lane_align)
    if lanes % lane_align != 0 or lanes <= max_lane_elems:
        lane_tile = lanes                       # full extent -> always legal
    else:
        # Prefer a 128-multiple that evenly divides lanes (no masked edge block).
        lane_tile = (_largest_divisor_tile(lanes, lane_align, max_lane_elems)
                     or max_lane_elems)
    rows_fit = max(1, target_block_bytes // (lane_tile * itemsize))
    if rows_fit >= rows or rows <= sub_align:
        row_tile = rows                         # full extent -> always legal
    else:
        row_tile = max(sub_align, (rows_fit // sub_align) * sub_align)
    return row_tile, lane_tile


def add_pos_emb(x, pos_emb, num_vecs, *, target_block_bytes=None,
                alias_input=True):
    """x: (b, n, c) with n % num_vecs == 0; pos_emb: (num_vecs, c)."""
    b, n, c = x.shape
    assert n % num_vecs == 0, "sequence length must be a multiple of num_vecs"
    assert pos_emb.shape == (num_vecs, c)
    if target_block_bytes is None:
        target_block_bytes = _default_block_bytes()

    groups = n // num_vecs
    rows, lanes = b * groups, num_vecs * c
    itemsize = jnp.dtype(x.dtype).itemsize
    sub_align = max(8, 32 // itemsize)

    # Lane-dense layout: flatten each (num_vecs, c) group into one row.
    x2 = x.reshape(rows, lanes)
    pos2 = pos_emb.astype(x.dtype).reshape(1, lanes)

    # VMEM-safety clamp (review): a huge non-128-aligned lane extent would
    # force lane_tile = lanes with >= sub_align*lanes bytes per block; pad the
    # lane axis to a 128 multiple instead and slice the result back.
    pad = 0
    if lanes % 128 != 0 and sub_align * lanes * itemsize > 4 * target_block_bytes:
        pad = 128 - lanes % 128
        x2 = jnp.pad(x2, ((0, 0), (0, pad)))
        pos2 = jnp.pad(pos2, ((0, 0), (0, pad)))
    lanes_p = lanes + pad

    row_tile, lane_tile = _choose_tiles(rows, lanes_p, itemsize, target_block_bytes)
    # Lane axis outer, row axis inner: pos block index is constant across the
    # inner loop, so pos stays VMEM-resident (its DMA is elided per row step).
    grid = (pl.cdiv(lanes_p, lane_tile), pl.cdiv(rows, row_tile))

    out2 = pl.pallas_call(
        _add_pos_emb_kernel,
        out_shape=jax.ShapeDtypeStruct((rows, lanes_p), x.dtype),
        grid_spec=pltpu.PrefetchScalarGridSpec(
            num_scalar_prefetch=0,
            grid=grid,
            in_specs=[
                pl.BlockSpec((row_tile, lane_tile), lambda lj, ri: (ri, lj)),
                pl.BlockSpec((1, lane_tile), lambda lj, ri: (0, lj)),
            ],
            out_specs=pl.BlockSpec((row_tile, lane_tile), lambda lj, ri: (ri, lj)),
        ),
        # v7x megacore: shard the (many-block) row axis across the 2 TCs; the
        # short lane axis is "arbitrary" so it is never the imbalanced split.
        compiler_params=pltpu.CompilerParams(
            dimension_semantics=("arbitrary", "parallel")),
        # Write the result into x2's buffer (halves allocator pressure around
        # a 100%-mem-bound op; donate x at the jit boundary to benefit fully).
        input_output_aliases={0: 0} if alias_input else {},
    )(x2, pos2)

    if pad:
        out2 = out2[:, :lanes]
    return out2.reshape(b, n, c)


# --------------------------------------------------------------------------
# Tests
# --------------------------------------------------------------------------
if __name__ == "__main__":
    key = jax.random.PRNGKey(0)
    k1, k2, k3, k4, k5, k6, k7, k8 = jax.random.split(key, 8)

    # ---- 1. Fused SoftSplit-embedding + AddPosEmb (small shapes) -----------
    # Real model: c_in = 49*128 = 6272, hidden = 512, num_vecs = 720.
    # Small analog: b=2, t=2, num_vecs=8, c_in=96, hidden=256.
    b, t, num_vecs, c_in, hidden = 2, 2, 8, 96, 256
    n = t * num_vecs
    patches = jax.random.normal(k1, (b, n, c_in), dtype=jnp.float32)
    weight = 0.05 * jax.random.normal(k2, (c_in, hidden), dtype=jnp.float32)
    bias = 0.05 * jax.random.normal(k3, (hidden,), dtype=jnp.float32)
    pos = 0.02 * jax.random.normal(k4, (num_vecs, hidden), dtype=jnp.float32)

    out = jax.block_until_ready(soft_split_embed_add_pos(patches, weight, bias, pos))
    ref = jnp.einsum("bnk,kh->bnh", patches, weight,
                     precision=jax.lax.Precision.HIGHEST) + bias
    ref = (ref.reshape(b, t, num_vecs, hidden) + pos[None, None]).reshape(b, n, hidden)
    assert out.shape == (b, n, hidden)
    assert jnp.allclose(out, ref, atol=5e-3, rtol=5e-3), "fused mismatch (config 1)"

    # Larger-M config exercising the cyclic pos index_map (tm=160 | num_vecs=320).
    b2, t2, nv2, c_in2, hid2 = 1, 2, 320, 128, 128
    n2 = t2 * nv2
    patches2 = jax.random.normal(k5, (b2, n2, c_in2), dtype=jnp.float32)
    weight2 = 0.05 * jax.random.normal(k6, (c_in2, hid2), dtype=jnp.float32)
    bias2 = 0.05 * jax.random.normal(k7, (hid2,), dtype=jnp.float32)
    pos2 = 0.02 * jax.random.normal(k8, (nv2, hid2), dtype=jnp.float32)
    out2 = jax.block_until_ready(
        soft_split_embed_add_pos(patches2, weight2, bias2, pos2))
    ref2 = jnp.einsum("bnk,kh->bnh", patches2, weight2,
                      precision=jax.lax.Precision.HIGHEST) + bias2
    ref2 = (ref2.reshape(b2, t2, nv2, hid2) + pos2[None, None]).reshape(b2, n2, hid2)
    assert jnp.allclose(out2, ref2, atol=5e-3, rtol=5e-3), "fused mismatch (config 2)"

    # ---- 2. Standalone AddPosEmb fallback ----------------------------------
    bx, nvx, gx, cx = 2, 8, 4, 512
    nx = gx * nvx
    ka, kb = jax.random.split(k1)
    x = jax.random.normal(ka, (bx, nx, cx), dtype=jnp.float32)
    pemb = 0.02 * jax.random.normal(kb, (nvx, cx), dtype=jnp.float32)
    refa = (x.reshape(bx, gx, nvx, cx) + pemb[None, None]).reshape(bx, nx, cx)
    outa = jax.block_until_ready(add_pos_emb(x, pemb, nvx))
    assert jnp.allclose(outa, refa, atol=1e-6), "standalone mismatch (config 1)"

    # Tiny block budget forces a multi-block grid with a partial row block.
    by, nvy, gy, cy = 3, 8, 5, 128
    ny = gy * nvy
    kc, kd = jax.random.split(kb)
    xb = jax.random.normal(kc, (by, ny, cy), dtype=jnp.float32)
    pb = 0.02 * jax.random.normal(kd, (nvy, cy), dtype=jnp.float32)
    refb = (xb.reshape(by, gy, nvy, cy) + pb[None, None]).reshape(by, ny, cy)
    outb = jax.block_until_ready(
        add_pos_emb(xb, pb, nvy, target_block_bytes=8 * 1024))
    assert jnp.allclose(outb, refb, atol=1e-6), "standalone mismatch (config 2)"

    print("KERNEL_OK")
</pallas_src>

<mosaic_0001>
module attributes {stable_mosaic.version = 11 : i64} {
  func.func @_embed_pos_kernel(%arg0: i32, %arg1: i32, %arg2: i32, %arg3: memref<32x96xf32, #tpu.memory_space<vmem>>, %arg4: memref<96x256xf32, #tpu.memory_space<vmem>>, %arg5: memref<1x256xf32, #tpu.memory_space<vmem>>, %arg6: memref<32x256xf32, #tpu.memory_space<vmem>>, %arg7: memref<32x256xf32, #tpu.memory_space<vmem>>, %arg8: memref<32x256xf32, #tpu.memory_space<vmem>>) attributes {dimension_semantics = [#tpu.dimension_semantics<parallel>, #tpu.dimension_semantics<parallel>, #tpu.dimension_semantics<arbitrary>], iteration_bounds = array<i64: 1, 1, 1>, scalar_prefetch = 0 : i64, scratch_operands = 1 : i64, tpu.core_type = #tpu.core_type<tc>, window_params = [{transform_indices = @transform_0, window_bounds = array<i64: 32, 96>}, {transform_indices = @transform_1, window_bounds = array<i64: 96, 256>}, {transform_indices = @transform_2, window_bounds = array<i64: 1, 256>}, {transform_indices = @transform_3, window_bounds = array<i64: 32, 256>}, {transform_indices = @transform_4, window_bounds = array<i64: 32, 256>}]} {
    %c0_i32 = arith.constant 0 : i32
    %0 = arith.cmpi eq, %arg2, %c0_i32 : i32
    %1 = arith.extui %0 : i1 to i32
    %c0_i32_0 = arith.constant 0 : i32
    %2 = arith.cmpi ne, %1, %c0_i32_0 : i32
    scf.if %2 {
      %cst_10 = arith.constant 0.000000e+00 : f32
      %12 = vector.broadcast %cst_10 : f32 to vector<32x256xf32>
      %c0_11 = arith.constant 0 : index
      %c0_12 = arith.constant 0 : index
      %13 = vector.load %arg8[%c0_11, %c0_12] : memref<32x256xf32, #tpu.memory_space<vmem>>, vector<32x256xf32>
      tpu.vector_store %arg8[%c0_11, %c0_12], %12 {strides = array<i32>} : memref<32x256xf32, #tpu.memory_space<vmem>>, vector<32x256xf32>,
    } else {
    }
    %c0 = arith.constant 0 : index
    %c0_1 = arith.constant 0 : index
    %3 = vector.load %arg8[%c0, %c0_1] : memref<32x256xf32, #tpu.memory_space<vmem>>, vector<32x256xf32>
    %c0_2 = arith.constant 0 : index
    %c0_3 = arith.constant 0 : index
    %4 = vector.load %arg3[%c0_2, %c0_3] : memref<32x96xf32, #tpu.memory_space<vmem>>, vector<32x96xf32>
    %c0_4 = arith.constant 0 : index
    %c0_5 = arith.constant 0 : index
    %5 = vector.load %arg4[%c0_4, %c0_5] : memref<96x256xf32, #tpu.memory_space<vmem>>, vector<96x256xf32>
    %cst = arith.constant dense<0.000000e+00> : vector<32x256xf32>
    %6 = tpu.matmul %4, %5, %cst {dimension_numbers = #tpu.dot_dimension_numbers<[1], [0], [0], [1], [0, 0, 1, 1], [], []>} : vector<32x96xf32>, vector<96x256xf32>, vector<32x256xf32> -> vector<32x256xf32>
    %7 = arith.addf %3, %6 : vector<32x256xf32>
    %c0_6 = arith.constant 0 : index
    %c0_7 = arith.constant 0 : index
    %8 = vector.load %arg8[%c0_6, %c0_7] : memref<32x256xf32, #tpu.memory_space<vmem>>, vector<32x256xf32>
    tpu.vector_store %arg8[%c0_6, %c0_7], %7 {strides = array<i32>} : memref<32x256xf32, #tpu.memory_space<vmem>>, vector<32x256xf32>,
    %c0_i32_8 = arith.constant 0 : i32
    %9 = arith.cmpi eq, %arg2, %c0_i32_8 : i32
    %10 = arith.extui %9 : i1 to i32
    %c0_i32_9 = arith.constant 0 : i32
    %11 = arith.cmpi ne, %10, %c0_i32_9 : i32
    scf.if %11 {
      %c0_10 = arith.constant 0 : index
      %c0_11 = arith.constant 0 : index
      %12 = vector.load %arg8[%c0_10, %c0_11] : memref<32x256xf32, #tpu.memory_space<vmem>>, vector<32x256xf32>
      %c0_12 = arith.constant 0 : index
      %c0_13 = arith.constant 0 : index
      %13 = vector.load %arg5[%c0_12, %c0_13] : memref<1x256xf32, #tpu.memory_space<vmem>>, vector<1x256xf32>
      %14 = vector.broadcast %13 : vector<1x256xf32> to vector<32x256xf32>
      %15 = arith.addf %12, %14 : vector<32x256xf32>
      %c0_14 = arith.constant 0 : index
      %c0_15 = arith.constant 0 : index
      %16 = vector.load %arg6[%c0_14, %c0_15] : memref<32x256xf32, #tpu.memory_space<vmem>>, vector<32x256xf32>
      %17 = arith.addf %15, %16 : vector<32x256xf32>
      %c0_16 = arith.constant 0 : index
      %c0_17 = arith.constant 0 : index
      %18 = vector.load %arg7[%c0_16, %c0_17] : memref<32x256xf32, #tpu.memory_space<vmem>>, vector<32x256xf32>
      tpu.vector_store %arg7[%c0_16, %c0_17], %17 {strides = array<i32>} : memref<32x256xf32, #tpu.memory_space<vmem>>, vector<32x256xf32>,
    } else {
    }
    return
  }
  func.func @transform_0(%arg0: i32, %arg1: i32, %arg2: i32) -> (i32, i32) {
    %c0_i32 = arith.constant 0 : i32
    return %arg0, %arg2 : i32, i32
  }
  func.func @transform_1(%arg0: i32, %arg1: i32, %arg2: i32) -> (i32, i32) {
    %c0_i32 = arith.constant 0 : i32
    return %arg2, %arg1 : i32, i32
  }
  func.func @transform_2(%arg0: i32, %arg1: i32, %arg2: i32) -> (i32, i32) {
    %c0_i32 = arith.constant 0 : i32
    %c0_i32_0 = arith.constant 0 : i32
    return %c0_i32, %arg1 : i32, i32
  }
  func.func @transform_3(%arg0: i32, %arg1: i32, %arg2: i32) -> (i32, i32) {
    %c0_i32 = arith.constant 0 : i32
    %c0_i32_0 = arith.constant 0 : i32
    return %c0_i32, %arg1 : i32, i32
  }
  func.func @transform_4(%arg0: i32, %arg1: i32, %arg2: i32) -> (i32, i32) {
    %c0_i32 = arith.constant 0 : i32
    return %arg0, %arg1 : i32, i32
  }
}

</mosaic_0001>

<llo_original>
// kernel: tpu_custom_call.1
$region0: #{tpu_custom_call.1}
  #allocation0 [shape = 'u32[]', space=smem, size = 0x4, offset = 0x4, fixed_abs, tag = 'smem constant byte address 0x4 - core index']
  #allocation1 [shape = 'u32[144,128]{1,0:T(1,128)}', space=vmem, size = 0x12000, scoped, tag = 'internal scratch']
  #allocation2 [shape = 'f32[32,256]{1,0:T(8,128)}', space=vmem, size = 0x8000, scoped, tag = 'scratch operand']
  %s0 = inlined_call_operand.hbm [shape: f32[32,96], index: 0, kind: input, shape index: {}]
  %s1 = inlined_call_operand.hbm [shape: f32[96,256], index: 1, kind: input, shape index: {}]
  %s2 = inlined_call_operand.vmem [shape: f32[1,256], index: 2, kind: input, shape index: {}]
  %s3 = inlined_call_operand.hbm [shape: f32[32,256], index: 3, kind: input, shape index: {}]
  %s4 = inlined_call_operand.hbm [shape: f32[32,256], index: 4, kind: output, shape index: {}]
  %s5 = sld [smem:[#allocation0]]
  $region46: #{tpu_custom_call.1} parent=0
    _
  %s7 = ssub.s32 1, %s5
  %s8 = scalar_select 0, %s7, %s5
  $region1: #{tpu_custom_call.1} parent=0
    #allocation3 [shape = 'u8[16384]{0}', space=vmem, size = 0x4000, scoped, tag = 'input window, operand 0, single buffered']
    #allocation4 [shape = 's32[1]{0}', space=sflag, size = 0x4, scoped, tag = 'scoped memory for tpu_custom_call.1']
    #allocation5 [shape = 's32[1]{0}', space=sflag, size = 0x4, scoped, tag = 'scoped memory for tpu_custom_call.1']
    #allocation6 [shape = 'u8[98304]{0}', space=vmem, size = 0x18000, scoped, tag = 'input window, operand 1, single buffered']
    #allocation7 [shape = 's32[1]{0}', space=sflag, size = 0x4, scoped, tag = 'scoped memory for tpu_custom_call.1']
    #allocation8 [shape = 'u8[32768]{0}', space=vmem, size = 0x8000, scoped, tag = 'input window, operand 3, single buffered']
    #allocation9 [shape = 'u8[32768]{0}', space=vmem, size = 0x8000, scoped, tag = 'output window, operand 0, single buffered']
    %9 = vsyncpa [#allocation4], 0
    %10 = vsyncpa [#allocation7], 0
    %11 = vsyncpa [#allocation5], 0
    // Predicated region
    $region2: #{tpu_custom_call.1} parent=1 // pred_check
      _
    $region3: #{tpu_custom_call.1} parent=1 // pred_check_branch
      %13 = sbr.rel (0) target = $region5
    $region4: #{tpu_custom_call.1} parent=1 // pred_region
      %s15 = ssub.s32 512, 512
      %16 = vsyncadd [#allocation4], %s15
      %s17 = sshll.u32 [#allocation3], 4
      %s18 = int_to_ptr.vmem [resolvable:$true] %s17
      %23 = dma.hbm_to_vmem [thread:$0]  %s0, 512, %s18, [#allocation4], 128, 128, 8
    $region5: #{tpu_custom_call.1} parent=1 // pred_fallthru
      _
    // Predicated region
    $region6: #{tpu_custom_call.1} parent=1 // pred_check
      _
    $region7: #{tpu_custom_call.1} parent=1 // pred_check_branch
      %25 = sbr.rel (0) target = $region9
    $region8: #{tpu_custom_call.1} parent=1 // pred_region
      %s27 = ssub.s32 3072, 3072
      %28 = vsyncadd [#allocation7], %s27
      %s29 = sshll.u32 [#allocation6], 4
      %s30 = int_to_ptr.vmem [resolvable:$true] %s29
      %35 = dma.hbm_to_vmem [thread:$0]  %s1, 3072, %s30, [#allocation7], 256, 256, 16
    $region9: #{tpu_custom_call.1} parent=1 // pred_fallthru
      _
    // Predicated region
    $region10: #{tpu_custom_call.1} parent=1 // pred_check
      _
    $region11: #{tpu_custom_call.1} parent=1 // pred_check_branch
      %37 = sbr.rel (0) target = $region13
    $region12: #{tpu_custom_call.1} parent=1 // pred_region
      _
    $region13: #{tpu_custom_call.1} parent=1 // pred_fallthru
      _
    // Predicated region
    $region14: #{tpu_custom_call.1} parent=1 // pred_check
      _
    $region15: #{tpu_custom_call.1} parent=1 // pred_check_branch
      %39 = sbr.rel (0) target = $region17
    $region16: #{tpu_custom_call.1} parent=1 // pred_region
      %s41 = ssub.s32 1024, 1024
      %42 = vsyncadd [#allocation7], %s41
      %s43 = sshll.u32 [#allocation8], 4
      %s44 = int_to_ptr.vmem [resolvable:$true] %s43
      %49 = dma.hbm_to_vmem [thread:$0]  %s3, 1024, %s44, [#allocation7], 256, 256, 16
    $region17: #{tpu_custom_call.1} parent=1 // pred_fallthru
      _
    // Predicated region
    $region18: #{tpu_custom_call.1} parent=1 // pred_check
      _
    $region19: #{tpu_custom_call.1} parent=1 // pred_check_branch
      %51 = sbr.rel (0) target = $region21
    $region20: #{tpu_custom_call.1} parent=1 // pred_region
      %52 = dma.done [#allocation4], 512
    $region21: #{tpu_custom_call.1} parent=1 // pred_fallthru
      _
    // Predicated region
    $region22: #{tpu_custom_call.1} parent=1 // pred_check
      _
    $region23: #{tpu_custom_call.1} parent=1 // pred_check_branch
      %54 = sbr.rel (0) target = $region25
    $region24: #{tpu_custom_call.1} parent=1 // pred_region
      %55 = dma.done [#allocation7], 3072
    $region25: #{tpu_custom_call.1} parent=1 // pred_fallthru
      _
    // Predicated region
    $region26: #{tpu_custom_call.1} parent=1 // pred_check
      _
    $region27: #{tpu_custom_call.1} parent=1 // pred_check_branch
      %57 = sbr.rel (0) target = $region29
    $region28: #{tpu_custom_call.1} parent=1 // pred_region
      %58 = dma.done [#allocation7], 1024
    $region29: #{tpu_custom_call.1} parent=1 // pred_fallthru
      _
    %p59 = scmp.eq.s32.totalorder 0, 0
    // Predicated region
    $region30: #{tpu_custom_call.1} parent=1 // pred_check
      %p60 = pneg %p59
    $region31: #{tpu_custom_call.1} parent=1 // pred_check_branch
      %62 = sbr.rel (%p60) target = $region33
    $region32: #{tpu_custom_call.1} parent=1 // pred_region
      %63 = vst [vmem:[#allocation2] sm:$0xff] 0.0
      %64 = vst [vmem:[#allocation2 + $0x8] sm:$0xff] 0.0
      %65 = vst [vmem:[#allocation2 + $0x10] sm:$0xff] 0.0
      %66 = vst [vmem:[#allocation2 + $0x18] sm:$0xff] 0.0
      %67 = vst [vmem:[#allocation2 + $0x20] sm:$0xff] 0.0
      %68 = vst [vmem:[#allocation2 + $0x28] sm:$0xff] 0.0
      %69 = vst [vmem:[#allocation2 + $0x30] sm:$0xff] 0.0
      %70 = vst [vmem:[#allocation2 + $0x38] sm:$0xff] 0.0
    $region33: #{tpu_custom_call.1} parent=1 // pred_fallthru
      _
    %v71 = vld [vmem:[#allocation2] sm:$0xff]
    %v72 = vld [vmem:[#allocation2 + $0x8] sm:$0xff]
    %v73 = vld [vmem:[#allocation2 + $0x10] sm:$0xff]
    %v74 = vld [vmem:[#allocation2 + $0x18] sm:$0xff]
    %v75 = vld [vmem:[#allocation2 + $0x20] sm:$0xff]
    %v76 = vld [vmem:[#allocation2 + $0x28] sm:$0xff]
    %v77 = vld [vmem:[#allocation2 + $0x30] sm:$0xff]
    %v78 = vld [vmem:[#allocation2 + $0x38] sm:$0xff]
    %v79 = vld [vmem:[#allocation3] sm:$0xff]
    %v80 = vld [vmem:[#allocation3 + $0x8] sm:$0xff]
    %v81 = vld [vmem:[#allocation3 + $0x10] sm:$0xff]
    %v82 = vld [vmem:[#allocation3 + $0x18] sm:$0xff]
    %v83 = vld [vmem:[#allocation6] sm:$0xff]
    %v84 = vld [vmem:[#allocation6 + $0x8] sm:$0xff]
    %v85 = vld [vmem:[#allocation6 + $0x10] sm:$0xff]
    %v86 = vld [vmem:[#allocation6 + $0x18] sm:$0xff]
    %v87 = vld [vmem:[#allocation6 + $0x20] sm:$0xff]
    %v88 = vld [vmem:[#allocation6 + $0x28] sm:$0xff]
    %v89 = vld [vmem:[#allocation6 + $0x30] sm:$0xff]
    %v90 = vld [vmem:[#allocation6 + $0x38] sm:$0xff]
    %v91 = vld [vmem:[#allocation6 + $0x40] sm:$0xff]
    %v92 = vld [vmem:[#allocation6 + $0x48] sm:$0xff]
    %v93 = vld [vmem:[#allocation6 + $0x50] sm:$0xff]
    %v94 = vld [vmem:[#allocation6 + $0x58] sm:$0xff]
    %v95 = vld [vmem:[#allocation6 + $0x60] sm:$0xff]
    %v96 = vld [vmem:[#allocation6 + $0x68] sm:$0xff]
    %v97 = vld [vmem:[#allocation6 + $0x70] sm:$0xff]
    %v98 = vld [vmem:[#allocation6 + $0x78] sm:$0xff]
    %v99 = vld [vmem:[#allocation6 + $0x80] sm:$0xff]
    %v100 = vld [vmem:[#allocation6 + $0x88] sm:$0xff]
    %v101 = vld [vmem:[#allocation6 + $0x90] sm:$0xff]
    %v102 = vld [vmem:[#allocation6 + $0x98] sm:$0xff]
    %v103 = vld [vmem:[#allocation6 + $0xa0] sm:$0xff]
    %v104 = vld [vmem:[#allocation6 + $0xa8] sm:$0xff]
    %v105 = vld [vmem:[#allocation6 + $0xb0] sm:$0xff]
    %v106 = vld [vmem:[#allocation6 + $0xb8] sm:$0xff]
    %vm107 = vcmask 785408
    %v109 = vsel %vm107, %v79, 0
    %v112 = vsel %vm107, %v80, 0
    %v115 = vsel %vm107, %v81, 0
    %v118 = vsel %vm107, %v82, 0
    %120 = vmatprep.subr.mxu0 %v84
    %121 = vmatpush1.msra.mxu0 %v83
    %122 = vmatprep.subr.mxu0 %v86
    %123 = vmatpush1.msra.mxu0 %v85
    %124 = vmatprep.subr.mxu0 %v88
    %125 = vmatpush1.msra.mxu0 %v87
    %126 = vmatprep.subr.mxu0 %v90
    %127 = vmatpush1.msra.mxu0 %v89
    %128 = vmatprep.subr.mxu0 %v92
    %129 = vmatpush1.msra.mxu0 %v91
    %130 = vmatprep.subr.mxu0 %v94
    %131 = vmatpush1.msra.mxu0 %v93
    %132 = vmatprep.subr.mxu0 %v96
    %133 = vmatpush1.msra.mxu0 %v95
    %134 = vmatprep.subr.mxu0 %v98
    %135 = vmatpush1.msra.mxu0 %v97
    %136 = vmatprep.subr.mxu0 %v100
    %137 = vmatpush1.msra.mxu0 %v99
    %138 = vmatprep.subr.mxu0 %v102
    %139 = vmatpush1.msra.mxu0 %v101
    %140 = vmatprep.subr.mxu0 %v104
    %141 = vmatpush1.msra.mxu0 %v103
    %142 = vmatprep.subr.mxu0 %v106
    %143 = vmatpush1.msra.mxu0 %v105
    %144 = vmatprep.subr.mxu0 0.0
    %145 = vmatpush1.msra.mxu0 0.0
    %146 = vmatprep.subr.mxu0 0.0
    %147 = vmatpush1.msra.mxu0 0.0
    %148 = vmatprep.subr.mxu0 0.0
    %149 = vmatpush1.msra.mxu0 0.0
    %150 = vmatprep.subr.mxu0 0.0
    %151 = vmatpush1.msra.mxu0 0.0
    %152 = vmatprep.subr.mxu0 0.0
    %153 = vmatpush1.msra.mxu0 0.0
    %154 = vmatprep.subr.mxu0 0.0
    %155 = vmatpush1.msra.mxu0 0.0
    %156 = vmatprep.subr.mxu0 0.0
    %157 = vmatpush1.msra.mxu0 0.0
    %158 = vmatprep.subr.mxu0 0.0
    %159 = vmatpush1.msra.mxu0 0.0
    %160 = vmatprep.subr.mxu0 0.0
    %161 = vmatpush1.msra.mxu0 0.0
    %162 = vmatprep.subr.mxu0 0.0
    %163 = vmatpush1.msra.mxu0 0.0
    %164 = vmatprep.subr.mxu0 0.0
    %165 = vmatpush1.msra.mxu0 0.0
    %166 = vmatprep.subr.mxu0 0.0
    %167 = vmatpush1.msra.mxu0 0.0
    %168 = vmatprep.subr.mxu0 0.0
    %169 = vmatpush1.msra.mxu0 0.0
    %170 = vmatprep.subr.mxu0 0.0
    %171 = vmatpush1.msra.mxu0 0.0
    %172 = vmatprep.subr.mxu0 0.0
    %173 = vmatpush1.msra.mxu0 0.0
    %174 = vmatprep.subr.mxu0 0.0
    %175 = vmatpush1.msra.mxu0 0.0
    %176 = vmatprep.subr.mxu0 0.0
    %177 = vmatpush1.msra.mxu0 0.0
    %178 = vmatprep.subr.mxu0 0.0
    %179 = vmatpush1.msra.mxu0 0.0
    %180 = vmatprep.subr.mxu0 0.0
    %181 = vmatpush1.msra.mxu0 0.0
    %182 = vmatprep.subr.mxu0 0.0
    %183 = vmatpush1.msra.mxu0 0.0
    %184 = vmatprep.mubr.f32.mxu0 0.0
    %185 = vmatmul.mubr.f32.gmra.mrb[0].mxu0 %v109
    %v186 = vpop.f32.mrb[0].mxu0
    %v187 = vadd.f32 0.0, %v186
    %v188 = vpop.f32.mrb[0].mxu0
    %v189 = vadd.f32 0.0, %v188
    %190 = vmatprep.mubr.f32.mxu0 0.0
    %191 = vmatmul.mubr.f32.gmra.mrb[0].mxu0 %v112
    %v192 = vpop.f32.mrb[0].mxu0
    %v193 = vadd.f32 0.0, %v192
    %v194 = vpop.f32.mrb[0].mxu0
    %v195 = vadd.f32 0.0, %v194
    %196 = vmatprep.mubr.f32.mxu0 0.0
    %197 = vmatmul.mubr.f32.gmra.mrb[0].mxu0 %v115
    %v198 = vpop.f32.mrb[0].mxu0
    %v199 = vadd.f32 0.0, %v198
    %v200 = vpop.f32.mrb[0].mxu0
    %v201 = vadd.f32 0.0, %v200
    %202 = vmatprep.mubr.f32.mxu0 0.0
    %203 = vmatmul.mubr.f32.gmra.mrb[0].mxu0 %v118
    %v204 = vpop.f32.mrb[0].mxu0
    %v205 = vadd.f32 0.0, %v204
    %v206 = vpop.f32.mrb[0].mxu0
    %v207 = vadd.f32 0.0, %v206
    %208 = vdwg.mxu0
    %v209 = vadd.f32 %v71, %v187
    %v210 = vadd.f32 %v72, %v189
    %v211 = vadd.f32 %v73, %v193
    %v212 = vadd.f32 %v74, %v195
    %v213 = vadd.f32 %v75, %v199
    %v214 = vadd.f32 %v76, %v201
    %v215 = vadd.f32 %v77, %v205
    %v216 = vadd.f32 %v78, %v207
    %217 = vst [vmem:[#allocation2] sm:$0xff] %v209
    %218 = vst [vmem:[#allocation2 + $0x8] sm:$0xff] %v210
    %219 = vst [vmem:[#allocation2 + $0x10] sm:$0xff] %v211
    %220 = vst [vmem:[#allocation2 + $0x18] sm:$0xff] %v212
    %221 = vst [vmem:[#allocation2 + $0x20] sm:$0xff] %v213
    %222 = vst [vmem:[#allocation2 + $0x28] sm:$0xff] %v214
    %223 = vst [vmem:[#allocation2 + $0x30] sm:$0xff] %v215
    %224 = vst [vmem:[#allocation2 + $0x38] sm:$0xff] %v216
    // Predicated region
    $region34: #{tpu_custom_call.1} parent=1 // pred_check
      %p225 = pneg %p59
    $region35: #{tpu_custom_call.1} parent=1 // pred_check_branch
      %227 = sbr.rel (%p225) target = $region37
    $region36: #{tpu_custom_call.1} parent=1 // pred_region
      %v228 = vld [vmem:[#allocation2] sm:$0xff]
      %v229 = vld [vmem:[#allocation2 + $0x8] sm:$0xff]
      %v230 = vld [vmem:[#allocation2 + $0x10] sm:$0xff]
      %v231 = vld [vmem:[#allocation2 + $0x18] sm:$0xff]
      %v232 = vld [vmem:[#allocation2 + $0x20] sm:$0xff]
      %v233 = vld [vmem:[#allocation2 + $0x28] sm:$0xff]
      %v234 = vld [vmem:[#allocation2 + $0x30] sm:$0xff]
      %v235 = vld [vmem:[#allocation2 + $0x38] sm:$0xff]
      %v236 = vld [vmem:[%s2] sm:$0x3]
      %v238 = vlaneseq
      %v239 = vshrl.u32 %v238, 7
      %v240 = vsub.s32 0, %v239
      %v241 = vrot.slane %v236, %v240
      %v242 = vlaneseq
      %v243 = vshrl.u32 %v242, 7
      %v244 = vsub.s32 1, %v243
      %v245 = vrot.slane %v236, %v244
      %v248 = vadd.f32 %v228, %v241
      %v249 = vadd.f32 %v229, %v245
      %v250 = vadd.f32 %v230, %v241
      %v251 = vadd.f32 %v231, %v245
      %v252 = vadd.f32 %v232, %v241
      %v253 = vadd.f32 %v233, %v245
      %v254 = vadd.f32 %v234, %v241
      %v255 = vadd.f32 %v235, %v245
      %v256 = vld [vmem:[#allocation8] sm:$0xff]
      %v257 = vld [vmem:[#allocation8 + $0x8] sm:$0xff]
      %v258 = vld [vmem:[#allocation8 + $0x10] sm:$0xff]
      %v259 = vld [vmem:[#allocation8 + $0x18] sm:$0xff]
      %v260 = vld [vmem:[#allocation8 + $0x20] sm:$0xff]
      %v261 = vld [vmem:[#allocation8 + $0x28] sm:$0xff]
      %v262 = vld [vmem:[#allocation8 + $0x30] sm:$0xff]
      %v263 = vld [vmem:[#allocation8 + $0x38] sm:$0xff]
      %v264 = vadd.f32 %v248, %v256
      %v265 = vadd.f32 %v249, %v257
      %v266 = vadd.f32 %v250, %v258
      %v267 = vadd.f32 %v251, %v259
      %v268 = vadd.f32 %v252, %v260
      %v269 = vadd.f32 %v253, %v261
      %v270 = vadd.f32 %v254, %v262
      %v271 = vadd.f32 %v255, %v263
      %272 = vst [vmem:[#allocation9] sm:$0xff] %v264
      %273 = vst [vmem:[#allocation9 + $0x8] sm:$0xff] %v265
      %274 = vst [vmem:[#allocation9 + $0x10] sm:$0xff] %v266
      %275 = vst [vmem:[#allocation9 + $0x18] sm:$0xff] %v267
      %276 = vst [vmem:[#allocation9 + $0x20] sm:$0xff] %v268
      %277 = vst [vmem:[#allocation9 + $0x28] sm:$0xff] %v269
      %278 = vst [vmem:[#allocation9 + $0x30] sm:$0xff] %v270
      %279 = vst [vmem:[#allocation9 + $0x38] sm:$0xff] %v271
    $region37: #{tpu_custom_call.1} parent=1 // pred_fallthru
      _
    // Predicated region
    $region38: #{tpu_custom_call.1} parent=1 // pred_check
      _
    $region39: #{tpu_custom_call.1} parent=1 // pred_check_branch
      %281 = sbr.rel (0) target = $region41
    $region40: #{tpu_custom_call.1} parent=1 // pred_region
      %s283 = ssub.s32 1024, 1024
      %284 = vsyncadd [#allocation5], %s283
      %s285 = sshll.u32 [#allocation9], 4
      %s286 = int_to_ptr.vmem [resolvable:$true] %s285
      %291 = dma.vmem_to_hbm [thread:$0]  %s286, 1024, %s4, [#allocation5], 256, 256, 16
    $region41: #{tpu_custom_call.1} parent=1 // pred_fallthru
      _
    // Predicated region
    $region42: #{tpu_custom_call.1} parent=1 // pred_check
      _
    $region43: #{tpu_custom_call.1} parent=1 // pred_check_branch
      %293 = sbr.rel (0) target = $region45
    $region44: #{tpu_custom_call.1} parent=1 // pred_region
      %294 = dma.done [#allocation5], 1024
    $region45: #{tpu_custom_call.1} parent=1 // pred_fallthru
      _
    %295 = vsyncpa [#allocation4], 1
    %296 = vsyncpa [#allocation7], 1
    %297 = vsyncpa [#allocation5], 1

</llo_original>
